<compile_context>
chip_gen: v7x
topology: tpu7x:2x2x1
jax: 0.10.0
libtpu: 0.0.40
codegen_flags: <defaults>
</compile_context>

<pallas_src>
import functools

import numpy as np
import jax
import jax.numpy as jnp
from jax.experimental import pallas as pl
from jax.experimental.pallas import tpu as pltpu


def _round_up(x, m):
    return ((x + m - 1) // m) * m


def _hist_kernel(lo_ref, hi_ref, probas_ref, labels_ref,
                 cnt_ref, sconf_ref, sacc_ref,
                 *, n_total, tile_n, steps_per_split, num_bins, n_classes):
    split = pl.program_id(0)
    step = pl.program_id(1)

    # Zero the resident accumulator slab at the start of each split's sweep.
    @pl.when(step == 0)
    def _():
        cnt_ref[...] = jnp.zeros_like(cnt_ref)
        sconf_ref[...] = jnp.zeros_like(sconf_ref)
        sacc_ref[...] = jnp.zeros_like(sacc_ref)

    prob = probas_ref[...]                                 # (C, TN) f32, samples on lanes
    lbl = labels_ref[...]                                  # (1, TN) i32

    # Ragged tail handled in-kernel (no wrapper-side pad copy): columns >= n_total
    # get prob = 0, which is strictly below every (threshold-folded) lower edge.
    start = (split * steps_per_split + step) * tile_n
    col = jax.lax.broadcasted_iota(jnp.int32, (1, tile_n), 1) + start
    prob = jnp.where(col < n_total, prob, 0.0)

    # one-hot "labels == class" along the class axis
    cls_ids = jax.lax.broadcasted_iota(jnp.int32, (n_classes, 1), 0)
    onehot = (lbl == cls_ids).astype(jnp.float32)          # (C, TN)

    # (C, num_bins, TN) cube: num_bins on sublanes, samples on lanes.
    lo = lo_ref[...][None, :, :]                           # (1, B, 1)
    hi = hi_ref[...][None, :, :]                           # (1, B, 1)
    p3 = prob[:, None, :]                                  # (C, 1, TN)
    oh3 = onehot[:, None, :]                               # (C, 1, TN)

    # strict inequalities on both edges, exactly as torch does
    mask = ((p3 > lo) & (p3 < hi)).astype(jnp.float32)     # (C, B, TN)

    cnt_ref[...] += jnp.sum(mask, axis=-1)[None]           # (1, C, B)
    sconf_ref[...] += jnp.sum(mask * p3, axis=-1)[None]
    sacc_ref[...] += jnp.sum(mask * oh3, axis=-1)[None]


def marginal_calibration_error(probas, labels, *, num_bins=15, threshold=0.01,
                               p=1, tile_n=None, num_splits=1,
                               probas_class_major=False):
    """Pallas-backed equivalent of MarginalCalibrationError.forward (returns scalar CE)."""
    probas = jnp.asarray(probas, jnp.float32)
    labels = jnp.asarray(labels, jnp.int32)

    if probas_class_major:
        # Caller already provides (C, N) — avoids the wrapper transpose HBM pass.
        n_classes, n = probas.shape
        probas_t = probas
    else:
        n, n_classes = probas.shape
        probas_t = probas.T            # single HBM pass; fold upstream if possible
    labels_row = labels.reshape(1, n)

    # Tile size: big and lane-dense, bounded by a per-temporary VMEM byte budget
    # (several (C, num_bins, tile_n) f32 cubes live at once) and the sample count.
    if tile_n is None:
        budget_elems = (6 * 1024 * 1024) // 4              # ~6 MiB f32 per cube temp
        tile_n = budget_elems // max(1, num_bins * n_classes)
        tile_n = min(8192, max(512, tile_n))
        # TODO(synk): for very large n_classes, add a class-block grid axis instead
        # of shrinking tile_n further.
    tile_n = min(tile_n, _round_up(n, 128))
    tile_n = max(128, (tile_n // 128) * 128)

    # Don't split more ways than there are tiles.
    num_splits = max(1, min(num_splits, -(-n // tile_n)))
    steps_per_split = -(-n // (tile_n * num_splits))

    # np.linspace edges (passed as kernel inputs — no captured constants).
    # Threshold folded into the lower edges: (p > thr) & (lo < p) == (p > max(lo, thr)).
    bins = np.linspace(0.0, 1.0, num_bins + 1).astype(np.float32)
    lo_edges = jnp.asarray(np.maximum(bins[:-1], np.float32(threshold)).reshape(num_bins, 1))
    hi_edges = jnp.asarray(bins[1:].reshape(num_bins, 1))

    kernel = functools.partial(_hist_kernel, n_total=n, tile_n=tile_n,
                               steps_per_split=steps_per_split,
                               num_bins=num_bins, n_classes=n_classes)

    out_sds = jax.ShapeDtypeStruct((num_splits, n_classes, num_bins), jnp.float32)

    def edge_map(s, i):
        return (0, 0)

    def data_map(s, i):
        return (0, s * steps_per_split + i)

    def out_map(s, i):
        return (s, 0, 0)

    cnt, sconf, sacc = pl.pallas_call(
        kernel,
        out_shape=[out_sds, out_sds, out_sds],
        grid_spec=pltpu.PrefetchScalarGridSpec(
            num_scalar_prefetch=0,
            grid=(num_splits, steps_per_split),
            in_specs=[
                pl.BlockSpec((num_bins, 1), edge_map),
                pl.BlockSpec((num_bins, 1), edge_map),
                pl.BlockSpec((n_classes, tile_n), data_map),
                pl.BlockSpec((1, tile_n), data_map),
            ],
            out_specs=[
                pl.BlockSpec((1, n_classes, num_bins), out_map),
                pl.BlockSpec((1, n_classes, num_bins), out_map),
                pl.BlockSpec((1, n_classes, num_bins), out_map),
            ],
        ),
        compiler_params=pltpu.CompilerParams(
            dimension_semantics=("parallel", "arbitrary"),
            vmem_limit_bytes=48 * 1024 * 1024),
    )(lo_edges, hi_edges, probas_t, labels_row)

    # Combine per-split slabs, then replicate torch nan / nansum semantics.
    cnt = jnp.sum(cnt, axis=0)                             # (C, num_bins)
    sconf = jnp.sum(sconf, axis=0)
    sacc = jnp.sum(sacc, axis=0)

    confs = jnp.where(cnt > 0, sconf / cnt, jnp.nan)       # per-bin mean conf (nan if empty)
    accs = jnp.where(cnt > 0, sacc / cnt, jnp.nan)         # per-bin accuracy (nan if empty)

    total = jnp.sum(cnt, axis=1, keepdims=True)            # nansum of counts per class
    probas_bin = cnt / total                               # 0/0 -> nan like torch
    terms = probas_bin * jnp.abs(confs - accs) ** p
    ce = jnp.nansum(terms, axis=1) ** (1.0 / p)            # per-class calibration error
    sq_ces = ce ** p
    return jnp.mean(sq_ces) ** (1.0 / p)


def _reference_numpy(probas, labels, num_bins=15, threshold=0.01, p=1):
    """Direct transcription of the PyTorch module, in numpy, for validation."""
    probas = np.asarray(probas, np.float32)
    labels = np.asarray(labels)
    bins = np.linspace(0.0, 1.0, num_bins + 1).astype(np.float32)
    _, n_classes = probas.shape
    sq_ces = []
    for c in range(n_classes):
        pc = probas[:, c]
        lc = (labels == c).astype(np.int64)
        keep = pc > threshold
        pc, lc = pc[keep], lc[keep]
        confs = np.full(num_bins, np.nan, np.float32)
        accs = np.full(num_bins, np.nan, np.float32)
        ns = np.zeros(num_bins, np.float32)
        for b in range(num_bins):
            in_bin = (bins[b] < pc) & (pc < bins[b + 1])
            ns[b] = in_bin.sum()
            if in_bin.sum() == 0:
                continue
            confs[b] = pc[in_bin].mean()
            accs[b] = (lc[in_bin] == 1).astype(np.float32).mean()
        with np.errstate(invalid="ignore", divide="ignore"):
            probas_bin = ns / np.nansum(ns)
            ce = np.nansum(probas_bin * np.abs(confs - accs) ** p) ** (1.0 / p)
        sq_ces.append(ce ** p)
    return np.mean(sq_ces) ** (1.0 / p)


if __name__ == "__main__":
    key = jax.random.PRNGKey(0)
    k1, k2, k3, k4 = jax.random.split(key, 4)

    # Test 1: small shapes consistent with the module's (N, num_classes) input.
    N, C = 64, 4
    probas = jax.nn.softmax(jax.random.normal(k1, (N, C), jnp.float32), axis=-1)
    labels = jax.random.randint(k2, (N,), 0, C, jnp.int32)
    out = marginal_calibration_error(probas, labels, num_bins=15, threshold=0.01, p=1)
    out = jax.block_until_ready(out)
    ref = _reference_numpy(np.asarray(probas), np.asarray(labels), 15, 0.01, 1)
    assert np.allclose(float(out), float(ref), rtol=1e-5, atol=1e-6), (float(out), ref)

    # Test 2: multi-tile accumulation + ragged tail + 2-way split path.
    N2, C2 = 200, 5
    probas2 = jax.nn.softmax(jax.random.normal(k3, (N2, C2), jnp.float32), axis=-1)
    labels2 = jax.random.randint(k4, (N2,), 0, C2, jnp.int32)
    out2 = marginal_calibration_error(probas2, labels2, num_bins=15, threshold=0.01,
                                      p=1, tile_n=128, num_splits=2)
    out2 = jax.block_until_ready(out2)
    ref2 = _reference_numpy(np.asarray(probas2), np.asarray(labels2), 15, 0.01, 1)
    assert np.allclose(float(out2), float(ref2), rtol=1e-5, atol=1e-6), (float(out2), ref2)

    print("KERNEL_OK")
</pallas_src>

<mosaic_0001>
module attributes {stable_mosaic.version = 11 : i64} {
  func.func @_hist_kernel(%arg0: i32, %arg1: i32, %arg2: memref<15x1xf32, #tpu.memory_space<vmem>>, %arg3: memref<15x1xf32, #tpu.memory_space<vmem>>, %arg4: memref<4x128xf32, #tpu.memory_space<vmem>>, %arg5: memref<1x128xi32, #tpu.memory_space<vmem>>, %arg6: memref<1x4x15xf32, #tpu.memory_space<vmem>>, %arg7: memref<1x4x15xf32, #tpu.memory_space<vmem>>, %arg8: memref<1x4x15xf32, #tpu.memory_space<vmem>>) attributes {dimension_semantics = [#tpu.dimension_semantics<parallel>, #tpu.dimension_semantics<arbitrary>], iteration_bounds = array<i64: 1, 1>, scalar_prefetch = 0 : i64, scratch_operands = 0 : i64, tpu.core_type = #tpu.core_type<tc>, window_params = [{pipeline_mode = #tpu.pipeline_mode<synchronous>, transform_indices = @transform_0, window_bounds = array<i64: 15, 1>}, {pipeline_mode = #tpu.pipeline_mode<synchronous>, transform_indices = @transform_1, window_bounds = array<i64: 15, 1>}, {transform_indices = @transform_2, window_bounds = array<i64: 4, 128>}, {transform_indices = @transform_3, window_bounds = array<i64: 1, 128>}, {transform_indices = @transform_4, window_bounds = array<i64: 1, 4, 15>}, {transform_indices = @transform_5, window_bounds = array<i64: 1, 4, 15>}, {transform_indices = @transform_6, window_bounds = array<i64: 1, 4, 15>}]} {
    %c0_i32 = arith.constant 0 : i32
    %0 = arith.cmpi eq, %arg1, %c0_i32 : i32
    %1 = arith.extui %0 : i1 to i32
    %c0_i32_0 = arith.constant 0 : i32
    %2 = arith.cmpi ne, %1, %c0_i32_0 : i32
    scf.if %2 {
      %cst_29 = arith.constant 0.000000e+00 : f32
      %57 = vector.broadcast %cst_29 : f32 to vector<1x4x15xf32>
      %c0_30 = arith.constant 0 : index
      %c0_31 = arith.constant 0 : index
      %c0_32 = arith.constant 0 : index
      %58 = vector.load %arg6[%c0_30, %c0_31, %c0_32] : memref<1x4x15xf32, #tpu.memory_space<vmem>>, vector<1x4x15xf32>
      tpu.vector_store %arg6[%c0_30, %c0_31, %c0_32], %57 {strides = array<i32>} : memref<1x4x15xf32, #tpu.memory_space<vmem>>, vector<1x4x15xf32>,
      %cst_33 = arith.constant 0.000000e+00 : f32
      %59 = vector.broadcast %cst_33 : f32 to vector<1x4x15xf32>
      %c0_34 = arith.constant 0 : index
      %c0_35 = arith.constant 0 : index
      %c0_36 = arith.constant 0 : index
      %60 = vector.load %arg7[%c0_34, %c0_35, %c0_36] : memref<1x4x15xf32, #tpu.memory_space<vmem>>, vector<1x4x15xf32>
      tpu.vector_store %arg7[%c0_34, %c0_35, %c0_36], %59 {strides = array<i32>} : memref<1x4x15xf32, #tpu.memory_space<vmem>>, vector<1x4x15xf32>,
      %cst_37 = arith.constant 0.000000e+00 : f32
      %61 = vector.broadcast %cst_37 : f32 to vector<1x4x15xf32>
      %c0_38 = arith.constant 0 : index
      %c0_39 = arith.constant 0 : index
      %c0_40 = arith.constant 0 : index
      %62 = vector.load %arg8[%c0_38, %c0_39, %c0_40] : memref<1x4x15xf32, #tpu.memory_space<vmem>>, vector<1x4x15xf32>
      tpu.vector_store %arg8[%c0_38, %c0_39, %c0_40], %61 {strides = array<i32>} : memref<1x4x15xf32, #tpu.memory_space<vmem>>, vector<1x4x15xf32>,
    } else {
    }
    %c0 = arith.constant 0 : index
    %c0_1 = arith.constant 0 : index
    %3 = vector.load %arg4[%c0, %c0_1] : memref<4x128xf32, #tpu.memory_space<vmem>>, vector<4x128xf32>
    %c0_2 = arith.constant 0 : index
    %c0_3 = arith.constant 0 : index
    %4 = vector.load %arg5[%c0_2, %c0_3] : memref<1x128xi32, #tpu.memory_space<vmem>>, vector<1x128xi32>
    %c1_i32 = arith.constant 1 : i32
    %5 = arith.muli %arg0, %c1_i32 : i32
    %6 = arith.addi %5, %arg1 : i32
    %c128_i32 = arith.constant 128 : i32
    %7 = arith.muli %6, %c128_i32 : i32
    %8 = tpu.iota {dimensions = array<i32: 1>} : vector<1x128xi32>
    %9 = vector.broadcast %7 : i32 to vector<1x128xi32>
    %10 = arith.addi %8, %9 : vector<1x128xi32>
    %c64_i32 = arith.constant 64 : i32
    %11 = vector.broadcast %c64_i32 : i32 to vector<1x128xi32>
    %12 = arith.cmpi slt, %10, %11 : vector<1x128xi32>
    %cst = arith.constant 0.000000e+00 : f32
    %13 = vector.shape_cast %12 : vector<1x128xi1> to vector<1x128xi1>
    %14 = vector.broadcast %13 : vector<1x128xi1> to vector<4x128xi1>
    %15 = vector.broadcast %cst : f32 to vector<4x128xf32>
    %16 = arith.select %14, %3, %15 : vector<4x128xi1>, vector<4x128xf32>
    %17 = tpu.iota {dimensions = array<i32: 0>} : vector<4x1xi32>
    %18 = vector.broadcast %4 : vector<1x128xi32> to vector<4x128xi32>
    %19 = vector.broadcast %17 : vector<4x1xi32> to vector<4x128xi32>
    %20 = arith.cmpi eq, %18, %19 : vector<4x128xi32>
    %21 = arith.extui %20 : vector<4x128xi1> to vector<4x128xi32>
    %22 = arith.sitofp %21 : vector<4x128xi32> to vector<4x128xf32>
    %c0_4 = arith.constant 0 : index
    %c0_5 = arith.constant 0 : index
    %23 = vector.load %arg2[%c0_4, %c0_5] : memref<15x1xf32, #tpu.memory_space<vmem>>, vector<15x1xf32>
    %24 = vector.shape_cast %23 : vector<15x1xf32> to vector<1x15x1xf32>
    %c0_6 = arith.constant 0 : index
    %c0_7 = arith.constant 0 : index
    %25 = vector.load %arg3[%c0_6, %c0_7] : memref<15x1xf32, #tpu.memory_space<vmem>>, vector<15x1xf32>
    %26 = vector.shape_cast %25 : vector<15x1xf32> to vector<1x15x1xf32>
    %27 = vector.shape_cast %16 : vector<4x128xf32> to vector<4x1x128xf32>
    %28 = vector.shape_cast %22 : vector<4x128xf32> to vector<4x1x128xf32>
    %29 = vector.broadcast %27 : vector<4x1x128xf32> to vector<4x15x128xf32>
    %30 = vector.broadcast %24 : vector<1x15x1xf32> to vector<4x15x128xf32>
    %31 = arith.cmpf ogt, %29, %30 : vector<4x15x128xf32>
    %32 = vector.broadcast %27 : vector<4x1x128xf32> to vector<4x15x128xf32>
    %33 = vector.broadcast %26 : vector<1x15x1xf32> to vector<4x15x128xf32>
    %34 = arith.cmpf olt, %32, %33 : vector<4x15x128xf32>
    %35 = arith.andi %31, %34 : vector<4x15x128xi1>
    %36 = arith.extui %35 : vector<4x15x128xi1> to vector<4x15x128xi32>
    %37 = arith.sitofp %36 : vector<4x15x128xi32> to vector<4x15x128xf32>
    %c0_8 = arith.constant 0 : index
    %c0_9 = arith.constant 0 : index
    %c0_10 = arith.constant 0 : index
    %38 = vector.load %arg6[%c0_8, %c0_9, %c0_10] : memref<1x4x15xf32, #tpu.memory_space<vmem>>, vector<1x4x15xf32>
    %cst_11 = arith.constant dense<0.000000e+00> : vector<4x15xf32>
    %39 = vector.multi_reduction <add>, %37, %cst_11 [2] : vector<4x15x128xf32> to vector<4x15xf32>
    %40 = vector.shape_cast %39 : vector<4x15xf32> to vector<1x4x15xf32>
    %41 = arith.addf %38, %40 : vector<1x4x15xf32>
    %c0_12 = arith.constant 0 : index
    %c0_13 = arith.constant 0 : index
    %c0_14 = arith.constant 0 : index
    %42 = vector.load %arg6[%c0_12, %c0_13, %c0_14] : memref<1x4x15xf32, #tpu.memory_space<vmem>>, vector<1x4x15xf32>
    tpu.vector_store %arg6[%c0_12, %c0_13, %c0_14], %41 {strides = array<i32>} : memref<1x4x15xf32, #tpu.memory_space<vmem>>, vector<1x4x15xf32>,
    %c0_15 = arith.constant 0 : index
    %c0_16 = arith.constant 0 : index
    %c0_17 = arith.constant 0 : index
    %43 = vector.load %arg7[%c0_15, %c0_16, %c0_17] : memref<1x4x15xf32, #tpu.memory_space<vmem>>, vector<1x4x15xf32>
    %44 = vector.broadcast %27 : vector<4x1x128xf32> to vector<4x15x128xf32>
    %45 = arith.mulf %37, %44 : vector<4x15x128xf32>
    %cst_18 = arith.constant dense<0.000000e+00> : vector<4x15xf32>
    %46 = vector.multi_reduction <add>, %45, %cst_18 [2] : vector<4x15x128xf32> to vector<4x15xf32>
    %47 = vector.shape_cast %46 : vector<4x15xf32> to vector<1x4x15xf32>
    %48 = arith.addf %43, %47 : vector<1x4x15xf32>
    %c0_19 = arith.constant 0 : index
    %c0_20 = arith.constant 0 : index
    %c0_21 = arith.constant 0 : index
    %49 = vector.load %arg7[%c0_19, %c0_20, %c0_21] : memref<1x4x15xf32, #tpu.memory_space<vmem>>, vector<1x4x15xf32>
    tpu.vector_store %arg7[%c0_19, %c0_20, %c0_21], %48 {strides = array<i32>} : memref<1x4x15xf32, #tpu.memory_space<vmem>>, vector<1x4x15xf32>,
    %c0_22 = arith.constant 0 : index
    %c0_23 = arith.constant 0 : index
    %c0_24 = arith.constant 0 : index
    %50 = vector.load %arg8[%c0_22, %c0_23, %c0_24] : memref<1x4x15xf32, #tpu.memory_space<vmem>>, vector<1x4x15xf32>
    %51 = vector.broadcast %28 : vector<4x1x128xf32> to vector<4x15x128xf32>
    %52 = arith.mulf %37, %51 : vector<4x15x128xf32>
    %cst_25 = arith.constant dense<0.000000e+00> : vector<4x15xf32>
    %53 = vector.multi_reduction <add>, %52, %cst_25 [2] : vector<4x15x128xf32> to vector<4x15xf32>
    %54 = vector.shape_cast %53 : vector<4x15xf32> to vector<1x4x15xf32>
    %55 = arith.addf %50, %54 : vector<1x4x15xf32>
    %c0_26 = arith.constant 0 : index
    %c0_27 = arith.constant 0 : index
    %c0_28 = arith.constant 0 : index
    %56 = vector.load %arg8[%c0_26, %c0_27, %c0_28] : memref<1x4x15xf32, #tpu.memory_space<vmem>>, vector<1x4x15xf32>
    tpu.vector_store %arg8[%c0_26, %c0_27, %c0_28], %55 {strides = array<i32>} : memref<1x4x15xf32, #tpu.memory_space<vmem>>, vector<1x4x15xf32>,
    return
  }
  func.func @transform_0(%arg0: i32, %arg1: i32) -> (i32, i32) {
    %c0_i32 = arith.constant 0 : i32
    %c0_i32_0 = arith.constant 0 : i32
    %c0_i32_1 = arith.constant 0 : i32
    return %c0_i32, %c0_i32_0 : i32, i32
  }
  func.func @transform_1(%arg0: i32, %arg1: i32) -> (i32, i32) {
    %c0_i32 = arith.constant 0 : i32
    %c0_i32_0 = arith.constant 0 : i32
    %c0_i32_1 = arith.constant 0 : i32
    return %c0_i32, %c0_i32_0 : i32, i32
  }
  func.func @transform_2(%arg0: i32, %arg1: i32) -> (i32, i32) {
    %c1_i32 = arith.constant 1 : i32
    %0 = arith.muli %arg0, %c1_i32 : i32
    %1 = arith.addi %0, %arg1 : i32
    %c0_i32 = arith.constant 0 : i32
    %c0_i32_0 = arith.constant 0 : i32
    return %c0_i32, %1 : i32, i32
  }
  func.func @transform_3(%arg0: i32, %arg1: i32) -> (i32, i32) {
    %c1_i32 = arith.constant 1 : i32
    %0 = arith.muli %arg0, %c1_i32 : i32
    %1 = arith.addi %0, %arg1 : i32
    %c0_i32 = arith.constant 0 : i32
    %c0_i32_0 = arith.constant 0 : i32
    return %c0_i32, %1 : i32, i32
  }
  func.func @transform_4(%arg0: i32, %arg1: i32) -> (i32, i32, i32) {
    %c0_i32 = arith.constant 0 : i32
    %c0_i32_0 = arith.constant 0 : i32
    %c0_i32_1 = arith.constant 0 : i32
    return %arg0, %c0_i32, %c0_i32_0 : i32, i32, i32
  }
  func.func @transform_5(%arg0: i32, %arg1: i32) -> (i32, i32, i32) {
    %c0_i32 = arith.constant 0 : i32
    %c0_i32_0 = arith.constant 0 : i32
    %c0_i32_1 = arith.constant 0 : i32
    return %arg0, %c0_i32, %c0_i32_0 : i32, i32, i32
  }
  func.func @transform_6(%arg0: i32, %arg1: i32) -> (i32, i32, i32) {
    %c0_i32 = arith.constant 0 : i32
    %c0_i32_0 = arith.constant 0 : i32
    %c0_i32_1 = arith.constant 0 : i32
    return %arg0, %c0_i32, %c0_i32_0 : i32, i32, i32
  }
}

</mosaic_0001>

<llo_original>
// kernel: tpu_custom_call.1
$region0: #{tpu_custom_call.1}
  #allocation0 [shape = 'u32[]', space=smem, size = 0x4, offset = 0x4, fixed_abs, tag = 'smem constant byte address 0x4 - core index']
  #allocation1 [shape = 'u32[144,128]{1,0:T(1,128)}', space=vmem, size = 0x12000, scoped, tag = 'internal scratch']
  %s0 = inlined_call_operand.vmem [shape: f32[15,1], index: 0, kind: input, shape index: {}]
  %s1 = inlined_call_operand.vmem [shape: f32[15,1], index: 1, kind: input, shape index: {}]
  %s2 = inlined_call_operand.vmem [shape: f32[4,64], index: 2, kind: input, shape index: {}]
  %s3 = inlined_call_operand.vmem [shape: s32[1,64], index: 3, kind: input, shape index: {}]
  %s4 = inlined_call_operand.hbm [shape: f32[1,4,15], index: 4, kind: output, shape index: {0}]
  %s5 = inlined_call_operand.hbm [shape: f32[1,4,15], index: 5, kind: output, shape index: {1}]
  %s6 = inlined_call_operand.hbm [shape: f32[1,4,15], index: 6, kind: output, shape index: {2}]
  %7 = xla_tuple %s4, %s5, %s6
  %s8 = sld [smem:[#allocation0]]
  $region46: #{tpu_custom_call.1} parent=0
    _
  %s10 = ssub.s32 1, %s8
  %s11 = scalar_select 0, %s10, %s8
  $region1: #{tpu_custom_call.1} parent=0
    #allocation2 [shape = 'u8[2048]{0}', space=vmem, size = 0x800, scoped, tag = 'output window, operand 0, single buffered']
    #allocation3 [shape = 's32[1]{0}', space=sflag, size = 0x4, scoped, tag = 'scoped memory for tpu_custom_call.1']
    #allocation4 [shape = 'u8[2048]{0}', space=vmem, size = 0x800, scoped, tag = 'output window, operand 1, single buffered']
    #allocation5 [shape = 's32[1]{0}', space=sflag, size = 0x4, scoped, tag = 'scoped memory for tpu_custom_call.1']
    #allocation6 [shape = 'u8[2048]{0}', space=vmem, size = 0x800, scoped, tag = 'output window, operand 2, single buffered']
    %12 = vsyncpa [#allocation3], 0
    %13 = vsyncpa [#allocation5], 0
    // Predicated region
    $region2: #{tpu_custom_call.1} parent=1 // pred_check
      _
    $region3: #{tpu_custom_call.1} parent=1 // pred_check_branch
      %15 = sbr.rel (0) target = $region5
    $region4: #{tpu_custom_call.1} parent=1 // pred_region
      _
    $region5: #{tpu_custom_call.1} parent=1 // pred_fallthru
      _
    // Predicated region
    $region6: #{tpu_custom_call.1} parent=1 // pred_check
      _
    $region7: #{tpu_custom_call.1} parent=1 // pred_check_branch
      %17 = sbr.rel (0) target = $region9
    $region8: #{tpu_custom_call.1} parent=1 // pred_region
      _
    $region9: #{tpu_custom_call.1} parent=1 // pred_fallthru
      _
    // Predicated region
    $region10: #{tpu_custom_call.1} parent=1 // pred_check
      _
    $region11: #{tpu_custom_call.1} parent=1 // pred_check_branch
      %19 = sbr.rel (0) target = $region13
    $region12: #{tpu_custom_call.1} parent=1 // pred_region
      %s20 = sadd.s32 0, 0
      %p21 = scmp.lt.s32.totalorder %s20, 0
      %s22 = scalar_select %p21, %s20, 0
      %s23 = smul.addr %s22, 4
      %s24 = scalar_lea.vmem %s2, %s23
      %s25 = sadd.s32 0, 0
    $region13: #{tpu_custom_call.1} parent=1 // pred_fallthru
      _
    // Predicated region
    $region14: #{tpu_custom_call.1} parent=1 // pred_check
      _
    $region15: #{tpu_custom_call.1} parent=1 // pred_check_branch
      %27 = sbr.rel (0) target = $region17
    $region16: #{tpu_custom_call.1} parent=1 // pred_region
      %s28 = sadd.s32 0, 0
      %p29 = scmp.lt.s32.totalorder %s28, 0
      %s30 = scalar_select %p29, %s28, 0
      %s31 = scalar_lea.vmem %s3, %s30
      %s32 = sadd.s32 0, 0
    $region17: #{tpu_custom_call.1} parent=1 // pred_fallthru
      _
    %s33 = sadd.s32 0, 0
    %p34 = scmp.lt.s32.totalorder %s33, 0
    %s35 = scalar_select %p34, %s33, 0
    %s36 = smul.addr %s35, 4
    %s37 = scalar_lea.vmem %s2, %s36
    %s38 = sadd.s32 0, 0
    %p39 = scmp.lt.s32.totalorder %s38, 0
    %s40 = scalar_select %p39, %s38, 0
    %s41 = scalar_lea.vmem %s3, %s40
    %s42 = sadd.s32 0, 0
    %p43 = scmp.lt.s32.totalorder %s42, 0
    %s44 = scalar_select %p43, %s42, 0
    %s45 = smul.addr %s44, 4
    %s46 = scalar_lea.vmem %s2, %s45
    %s47 = sadd.s32 0, 0
    %s48 = sadd.s32 0, 0
    %p49 = scmp.lt.s32.totalorder %s48, 0
    %s50 = scalar_select %p49, %s48, 0
    %s51 = scalar_lea.vmem %s3, %s50
    %s52 = sadd.s32 0, 0
    %p53 = scmp.eq.s32.totalorder 0, 0
    // Predicated region
    $region18: #{tpu_custom_call.1} parent=1 // pred_check
      %p54 = pneg %p53
    $region19: #{tpu_custom_call.1} parent=1 // pred_check_branch
      %56 = sbr.rel (%p54) target = $region21
    $region20: #{tpu_custom_call.1} parent=1 // pred_region
      %vm57 = vcmask 117760
      %58 = vst.msk [vmem:[#allocation2] sm:$0xf] %vm57, 0.0
      %59 = vst.msk [vmem:[#allocation4] sm:$0xf] %vm57, 0.0
      %60 = vst.msk [vmem:[#allocation6] sm:$0xf] %vm57, 0.0
    $region21: #{tpu_custom_call.1} parent=1 // pred_fallthru
      _
    %v61 = vld [vmem:[%s46] sm:$0xf]
    %v62 = vld [vmem:[%s51] sm:$0x1]
    %s63 = sadd.s32 0, 0
    %s64 = smul.u32 %s63, 128
    %v65 = vlaneseq
    %v66 = vand.u32 %v65, 127
    %v67 = vstv %s64
    %v68 = vadd.s32 %v66, %v67
    %vm69 = vcmp.lt.s32.totalorder %v68, 64
    %v70 = vsel %vm69, 1, 0
    %vm71 = vcmp.eq.s32.totalorder %v70, 1
    %v72 = vsel %vm71, %v61, 0.0
    %v73 = vlaneseq
    %v74 = vshrl.u32 %v73, 7
    %v75 = vlaneseq
    %v76 = vshrl.u32 %v75, 7
    %v77 = vsub.s32 0, %v76
    %v78 = vrot.slane %v62, %v77
    %vm79 = vcmp.eq.s32.totalorder %v78, %v74
    %v80 = vsel %vm79, 1, 0
    %v81 = vcvt.s32.f32 %v80
    %v82 = vld [vmem:[%s0] sm:$0xff]
    %v83 = vld [vmem:[%s0 + $0x8] sm:$0x7f]
    %v84 = vld [vmem:[%s1] sm:$0xff]
    %v85 = vld [vmem:[%s1 + $0x8] sm:$0x7f]
    %v88 = vunpack.c.l.s4 1966171168
    %v89 = vunpack.c.0.s8 %v88
    %v90 = vlaneseq
    %v91 = vshrl.u32 %v90, 7
    %v92 = vsub.s32 %v89, %v91
    %v93 = vrot.slane %v72, %v92
    %v94 = vcombine.high %v93, %v93
    %v96 = vunpack.c.l.s4 1966171168
    %v97 = vunpack.c.0.s8 %v96
    %v98 = vlaneseq
    %v99 = vshrl.u32 %v98, 7
    %v100 = vsub.s32 %v97, %v99
    %v101 = vrot.slane %v93, %v100
    %v103 = vunpack.c.l.s4 1966171168
    %v104 = vunpack.c.0.s8 %v103
    %v105 = vlaneseq
    %v106 = vshrl.u32 %v105, 7
    %v107 = vsub.s32 %v104, %v106
    %v108 = vrot.slane %v94, %v107
    %v109 = vcombine.high %v101, %v101
    %v110 = vcombine.high %v108, %v108
    %v113 = vunpack.c.l.s4 1966171168
    %v114 = vunpack.c.0.s8 %v113
    %v115 = vlaneseq
    %v116 = vshrl.u32 %v115, 7
    %v117 = vsub.s32 %v114, %v116
    %v118 = vrot.slane %v81, %v117
    %v119 = vcombine.high %v118, %v118
    %v121 = vunpack.c.l.s4 1966171168
    %v122 = vunpack.c.0.s8 %v121
    %v123 = vlaneseq
    %v124 = vshrl.u32 %v123, 7
    %v125 = vsub.s32 %v122, %v124
    %v126 = vrot.slane %v118, %v125
    %v128 = vunpack.c.l.s4 1966171168
    %v129 = vunpack.c.0.s8 %v128
    %v130 = vlaneseq
    %v131 = vshrl.u32 %v130, 7
    %v132 = vsub.s32 %v129, %v131
    %v133 = vrot.slane %v119, %v132
    %v134 = vcombine.high %v126, %v126
    %v135 = vcombine.high %v133, %v133
    %v136 = vlaneseq
    %v137 = vshrl.u32 %v136, 7
    %v138 = vsub.s32 0, %v137
    %v139 = vrot.slane %v101, %v138
    %v140 = vlaneseq
    %v141 = vshrl.u32 %v140, 7
    %v142 = vsub.s32 0, %v141
    %v143 = vrot.slane %v108, %v142
    %v144 = vlaneseq
    %v145 = vshrl.u32 %v144, 7
    %v146 = vsub.s32 0, %v145
    %v147 = vrot.slane %v109, %v146
    %v148 = vlaneseq
    %v149 = vshrl.u32 %v148, 7
    %v150 = vsub.s32 0, %v149
    %v151 = vrot.slane %v110, %v150
    %157 = vset.pattern.permute.xlu0 0
    %158 = vperm.xlu0 %157, %v82
    %v159 = vpop.permute.xlu0 %158
    %162 = vset.pattern.permute.xlu0 0
    %163 = vperm.xlu0 %162, %v83
    %v164 = vpop.permute.xlu0 %163
    %vm166 = vcmp.gt.f32.partialorder %v139, %v159
    %vm167 = vcmp.gt.f32.partialorder %v139, %v164
    %vm168 = vcmp.gt.f32.partialorder %v143, %v159
    %vm169 = vcmp.gt.f32.partialorder %v143, %v164
    %vm170 = vcmp.gt.f32.partialorder %v147, %v159
    %vm171 = vcmp.gt.f32.partialorder %v147, %v164
    %vm172 = vcmp.gt.f32.partialorder %v151, %v159
    %vm173 = vcmp.gt.f32.partialorder %v151, %v164
    %175 = vset.pattern.permute.xlu0 0
    %176 = vperm.xlu0 %175, %v84
    %v177 = vpop.permute.xlu0 %176
    %180 = vset.pattern.permute.xlu0 0
    %181 = vperm.xlu0 %180, %v85
    %v182 = vpop.permute.xlu0 %181
    %vm184 = vcmp.lt.f32.partialorder %v139, %v177
    %vm185 = vcmp.lt.f32.partialorder %v139, %v182
    %vm186 = vcmp.lt.f32.partialorder %v143, %v177
    %vm187 = vcmp.lt.f32.partialorder %v143, %v182
    %vm188 = vcmp.lt.f32.partialorder %v147, %v177
    %vm189 = vcmp.lt.f32.partialorder %v147, %v182
    %vm190 = vcmp.lt.f32.partialorder %v151, %v177
    %vm191 = vcmp.lt.f32.partialorder %v151, %v182
    %vm192 = vmand %vm166, %vm184
    %vm193 = vmand %vm167, %vm185
    %vm194 = vmand %vm168, %vm186
    %vm195 = vmand %vm169, %vm187
    %vm196 = vmand %vm170, %vm188
    %vm197 = vmand %vm171, %vm189
    %vm198 = vmand %vm172, %vm190
    %vm199 = vmand %vm173, %vm191
    %v200 = vsel %vm192, 1, 0
    %v201 = vsel %vm193, 1, 0
    %v202 = vsel %vm194, 1, 0
    %v203 = vsel %vm195, 1, 0
    %v204 = vsel %vm196, 1, 0
    %v205 = vsel %vm197, 1, 0
    %v206 = vsel %vm198, 1, 0
    %v207 = vsel %vm199, 1, 0
    %v208 = vcvt.s32.f32 %v200
    %v209 = vcvt.s32.f32 %v201
    %v210 = vcvt.s32.f32 %v202
    %v211 = vcvt.s32.f32 %v203
    %v212 = vcvt.s32.f32 %v204
    %v213 = vcvt.s32.f32 %v205
    %v214 = vcvt.s32.f32 %v206
    %v215 = vcvt.s32.f32 %v207
    %v216 = vld [vmem:[#allocation2] sm:$0xf]
    %217 = vadd.xlane.f32.xlu0 %v208
    %v218 = vpop.xlane.xlu0 %217
    %vm219 = vcmask 1046528
    %v220 = vsel %vm219, %v209, 0.0
    %221 = vadd.xlane.f32.xlu0 %v220
    %v222 = vpop.xlane.xlu0 %221
    %223 = vadd.xlane.f32.xlu0 %v210
    %v224 = vpop.xlane.xlu0 %223
    %v225 = vsel %vm219, %v211, 0.0
    %226 = vadd.xlane.f32.xlu0 %v225
    %v227 = vpop.xlane.xlu0 %226
    %228 = vadd.xlane.f32.xlu0 %v212
    %v229 = vpop.xlane.xlu0 %228
    %v230 = vsel %vm219, %v213, 0.0
    %231 = vadd.xlane.f32.xlu0 %v230
    %v232 = vpop.xlane.xlu0 %231
    %233 = vadd.xlane.f32.xlu0 %v214
    %v234 = vpop.xlane.xlu0 %233
    %v235 = vsel %vm219, %v215, 0.0
    %236 = vadd.xlane.f32.xlu0 %v235
    %v237 = vpop.xlane.xlu0 %236
    %v246 = vlaneseq
    %v247 = vshrl.u32 %v246, 7
    %v248 = vsub.s32 %v66, %v247
    %v249 = vrot.slane %v218, %v248
    %v250 = vadd.s32 %v66, 4294967288
    %v251 = vlaneseq
    %v252 = vshrl.u32 %v251, 7
    %v253 = vsub.s32 %v250, %v252
    %v254 = vrot.slane %v222, %v253
    %vm255 = vcmask 130112
    %v256 = vsel %vm255, %v254, %v249
    %v257 = vlaneseq
    %v258 = vshrl.u32 %v257, 7
    %v259 = vsub.s32 %v66, %v258
    %v260 = vrot.slane %v224, %v259
    %v261 = vlaneseq
    %v262 = vshrl.u32 %v261, 7
    %v263 = vsub.s32 %v250, %v262
    %v264 = vrot.slane %v227, %v263
    %v265 = vsel %vm255, %v264, %v260
    %v266 = vlaneseq
    %v267 = vshrl.u32 %v266, 7
    %v268 = vsub.s32 %v66, %v267
    %v269 = vrot.slane %v229, %v268
    %v270 = vlaneseq
    %v271 = vshrl.u32 %v270, 7
    %v272 = vsub.s32 %v250, %v271
    %v273 = vrot.slane %v232, %v272
    %v274 = vsel %vm255, %v273, %v269
    %v275 = vlaneseq
    %v276 = vshrl.u32 %v275, 7
    %v277 = vsub.s32 %v66, %v276
    %v278 = vrot.slane %v234, %v277
    %v279 = vlaneseq
    %v280 = vshrl.u32 %v279, 7
    %v281 = vsub.s32 %v250, %v280
    %v282 = vrot.slane %v237, %v281
    %v283 = vsel %vm255, %v282, %v278
    %vm284 = vcmask 1041409
    %v285 = vsel %vm284, %v265, %v256
    %vm286 = vcmask 1042434
    %v287 = vsel %vm286, %v274, %v285
    %vm288 = vcmask 1043459
    %v289 = vsel %vm288, %v283, %v287
    %v291 = vadd.f32 %v216, %v289
    %vm292 = vcmask 117760
    %293 = vst.msk [vmem:[#allocation2] sm:$0xf] %vm292, %v291
    %v294 = vld [vmem:[#allocation4] sm:$0xf]
    %v295 = vmul.f32 %v208, %v139
    %v296 = vmul.f32 %v209, %v139
    %v297 = vmul.f32 %v210, %v143
    %v298 = vmul.f32 %v211, %v143
    %v299 = vmul.f32 %v212, %v147
    %v300 = vmul.f32 %v213, %v147
    %v301 = vmul.f32 %v214, %v151
    %v302 = vmul.f32 %v215, %v151
    %303 = vadd.xlane.f32.xlu0 %v295
    %v304 = vpop.xlane.xlu0 %303
    %v305 = vsel %vm219, %v296, 0.0
    %306 = vadd.xlane.f32.xlu0 %v305
    %v307 = vpop.xlane.xlu0 %306
    %308 = vadd.xlane.f32.xlu0 %v297
    %v309 = vpop.xlane.xlu0 %308
    %v310 = vsel %vm219, %v298, 0.0
    %311 = vadd.xlane.f32.xlu0 %v310
    %v312 = vpop.xlane.xlu0 %311
    %313 = vadd.xlane.f32.xlu0 %v299
    %v314 = vpop.xlane.xlu0 %313
    %v315 = vsel %vm219, %v300, 0.0
    %316 = vadd.xlane.f32.xlu0 %v315
    %v317 = vpop.xlane.xlu0 %316
    %318 = vadd.xlane.f32.xlu0 %v301
    %v319 = vpop.xlane.xlu0 %318
    %v320 = vsel %vm219, %v302, 0.0
    %321 = vadd.xlane.f32.xlu0 %v320
    %v322 = vpop.xlane.xlu0 %321
    %v331 = vlaneseq
    %v332 = vshrl.u32 %v331, 7
    %v333 = vsub.s32 %v66, %v332
    %v334 = vrot.slane %v304, %v333
    %v335 = vlaneseq
    %v336 = vshrl.u32 %v335, 7
    %v337 = vsub.s32 %v250, %v336
    %v338 = vrot.slane %v307, %v337
    %v339 = vsel %vm255, %v338, %v334
    %v340 = vlaneseq
    %v341 = vshrl.u32 %v340, 7
    %v342 = vsub.s32 %v66, %v341
    %v343 = vrot.slane %v309, %v342
    %v344 = vlaneseq
    %v345 = vshrl.u32 %v344, 7
    %v346 = vsub.s32 %v250, %v345
    %v347 = vrot.slane %v312, %v346
    %v348 = vsel %vm255, %v347, %v343
    %v349 = vlaneseq
    %v350 = vshrl.u32 %v349, 7
    %v351 = vsub.s32 %v66, %v350
    %v352 = vrot.slane %v314, %v351
    %v353 = vlaneseq
    %v354 = vshrl.u32 %v353, 7
    %v355 = vsub.s32 %v250, %v354
    %v356 = vrot.slane %v317, %v355
    %v357 = vsel %vm255, %v356, %v352
    %v358 = vlaneseq
    %v359 = vshrl.u32 %v358, 7
    %v360 = vsub.s32 %v66, %v359
    %v361 = vrot.slane %v319, %v360
    %v362 = vlaneseq
    %v363 = vshrl.u32 %v362, 7
    %v364 = vsub.s32 %v250, %v363
    %v365 = vrot.slane %v322, %v364
    %v366 = vsel %vm255, %v365, %v361
    %v367 = vsel %vm284, %v348, %v339
    %v368 = vsel %vm286, %v357, %v367
    %v369 = vsel %vm288, %v366, %v368
    %v371 = vadd.f32 %v294, %v369
    %372 = vst.msk [vmem:[#allocation4] sm:$0xf] %vm292, %v371
    %v373 = vld [vmem:[#allocation6] sm:$0xf]
    %v374 = vlaneseq
    %v375 = vshrl.u32 %v374, 7
    %v376 = vsub.s32 0, %v375
    %v377 = vrot.slane %v126, %v376
    %v378 = vlaneseq
    %v379 = vshrl.u32 %v378, 7
    %v380 = vsub.s32 0, %v379
    %v381 = vrot.slane %v133, %v380
    %v382 = vlaneseq
    %v383 = vshrl.u32 %v382, 7
    %v384 = vsub.s32 0, %v383
    %v385 = vrot.slane %v134, %v384
    %v386 = vlaneseq
    %v387 = vshrl.u32 %v386, 7
    %v388 = vsub.s32 0, %v387
    %v389 = vrot.slane %v135, %v388
    %v394 = vmul.f32 %v208, %v377
    %v395 = vmul.f32 %v209, %v377
    %v396 = vmul.f32 %v210, %v381
    %v397 = vmul.f32 %v211, %v381
    %v398 = vmul.f32 %v212, %v385
    %v399 = vmul.f32 %v213, %v385
    %v400 = vmul.f32 %v214, %v389
    %v401 = vmul.f32 %v215, %v389
    %402 = vadd.xlane.f32.xlu0 %v394
    %v403 = vpop.xlane.xlu0 %402
    %v404 = vsel %vm219, %v395, 0.0
    %405 = vadd.xlane.f32.xlu0 %v404
    %v406 = vpop.xlane.xlu0 %405
    %407 = vadd.xlane.f32.xlu0 %v396
    %v408 = vpop.xlane.xlu0 %407
    %v409 = vsel %vm219, %v397, 0.0
    %410 = vadd.xlane.f32.xlu0 %v409
    %v411 = vpop.xlane.xlu0 %410
    %412 = vadd.xlane.f32.xlu0 %v398
    %v413 = vpop.xlane.xlu0 %412
    %v414 = vsel %vm219, %v399, 0.0
    %415 = vadd.xlane.f32.xlu0 %v414
    %v416 = vpop.xlane.xlu0 %415
    %417 = vadd.xlane.f32.xlu0 %v400
    %v418 = vpop.xlane.xlu0 %417
    %v419 = vsel %vm219, %v401, 0.0
    %420 = vadd.xlane.f32.xlu0 %v419
    %v421 = vpop.xlane.xlu0 %420
    %v430 = vlaneseq
    %v431 = vshrl.u32 %v430, 7
    %v432 = vsub.s32 %v66, %v431
    %v433 = vrot.slane %v403, %v432
    %v434 = vlaneseq
    %v435 = vshrl.u32 %v434, 7
    %v436 = vsub.s32 %v250, %v435
    %v437 = vrot.slane %v406, %v436
    %v438 = vsel %vm255, %v437, %v433
    %v439 = vlaneseq
    %v440 = vshrl.u32 %v439, 7
    %v441 = vsub.s32 %v66, %v440
    %v442 = vrot.slane %v408, %v441
    %v443 = vlaneseq
    %v444 = vshrl.u32 %v443, 7
    %v445 = vsub.s32 %v250, %v444
    %v446 = vrot.slane %v411, %v445
    %v447 = vsel %vm255, %v446, %v442
    %v448 = vlaneseq
    %v449 = vshrl.u32 %v448, 7
    %v450 = vsub.s32 %v66, %v449
    %v451 = vrot.slane %v413, %v450
    %v452 = vlaneseq
    %v453 = vshrl.u32 %v452, 7
    %v454 = vsub.s32 %v250, %v453
    %v455 = vrot.slane %v416, %v454
    %v456 = vsel %vm255, %v455, %v451
    %v457 = vlaneseq
    %v458 = vshrl.u32 %v457, 7
    %v459 = vsub.s32 %v66, %v458
    %v460 = vrot.slane %v418, %v459
    %v461 = vlaneseq
    %v462 = vshrl.u32 %v461, 7
    %v463 = vsub.s32 %v250, %v462
    %v464 = vrot.slane %v421, %v463
    %v465 = vsel %vm255, %v464, %v460
    %v466 = vsel %vm284, %v447, %v438
    %v467 = vsel %vm286, %v456, %v466
    %v468 = vsel %vm288, %v465, %v467
    %v470 = vadd.f32 %v373, %v468
    %471 = vst.msk [vmem:[#allocation6] sm:$0xf] %vm292, %v470
    // Predicated region
    $region22: #{tpu_custom_call.1} parent=1 // pred_check
      _
    $region23: #{tpu_custom_call.1} parent=1 // pred_check_branch
      %473 = sbr.rel (0) target = $region25
    $region24: #{tpu_custom_call.1} parent=1 // pred_region
      %s475 = ssub.s32 64, 64
      %476 = vsyncadd [#allocation3], %s475
      %s478 = sshll.u32 [#allocation2], 4
      %s479 = int_to_ptr.vmem [resolvable:$true] %s478
      %481 = dma.vmem_to_hbm [thread:$0]  %s479, 64, %s4, [#allocation3]
    $region25: #{tpu_custom_call.1} parent=1 // pred_fallthru
      _
    // Predicated region
    $region26: #{tpu_custom_call.1} parent=1 // pred_check
      _
    $region27: #{tpu_custom_call.1} parent=1 // pred_check_branch
      %483 = sbr.rel (0) target = $region29
    $region28: #{tpu_custom_call.1} parent=1 // pred_region
      %s485 = ssub.s32 64, 64
      %486 = vsyncadd [#allocation5], %s485
      %s488 = sshll.u32 [#allocation4], 4
      %s489 = int_to_ptr.vmem [resolvable:$true] %s488
      %491 = dma.vmem_to_hbm [thread:$0]  %s489, 64, %s5, [#allocation5]
    $region29: #{tpu_custom_call.1} parent=1 // pred_fallthru
      _
    // Predicated region
    $region30: #{tpu_custom_call.1} parent=1 // pred_check
      _
    $region31: #{tpu_custom_call.1} parent=1 // pred_check_branch
      %493 = sbr.rel (0) target = $region33
    $region32: #{tpu_custom_call.1} parent=1 // pred_region
      %s495 = ssub.s32 64, 64
      %496 = vsyncadd [#allocation5], %s495
      %s498 = sshll.u32 [#allocation6], 4
      %s499 = int_to_ptr.vmem [resolvable:$true] %s498
      %501 = dma.vmem_to_hbm [thread:$0]  %s499, 64, %s6, [#allocation5]
    $region33: #{tpu_custom_call.1} parent=1 // pred_fallthru
      _
    // Predicated region
    $region34: #{tpu_custom_call.1} parent=1 // pred_check
      _
    $region35: #{tpu_custom_call.1} parent=1 // pred_check_branch
      %503 = sbr.rel (0) target = $region37
    $region36: #{tpu_custom_call.1} parent=1 // pred_region
      %504 = dma.done [#allocation3], 64
    $region37: #{tpu_custom_call.1} parent=1 // pred_fallthru
      _
    // Predicated region
    $region38: #{tpu_custom_call.1} parent=1 // pred_check
      _
    $region39: #{tpu_custom_call.1} parent=1 // pred_check_branch
      %506 = sbr.rel (0) target = $region41
    $region40: #{tpu_custom_call.1} parent=1 // pred_region
      %507 = dma.done [#allocation5], 64
    $region41: #{tpu_custom_call.1} parent=1 // pred_fallthru
      _
    // Predicated region
    $region42: #{tpu_custom_call.1} parent=1 // pred_check
      _
    $region43: #{tpu_custom_call.1} parent=1 // pred_check_branch
      %509 = sbr.rel (0) target = $region45
    $region44: #{tpu_custom_call.1} parent=1 // pred_region
      %510 = dma.done [#allocation5], 64
    $region45: #{tpu_custom_call.1} parent=1 // pred_fallthru
      _
    %511 = vsyncpa [#allocation3], 1
    %512 = vsyncpa [#allocation5], 1

</llo_original>
